<compile_context>
chip_gen: v6e
topology: v6e:2x2x1
jax: 0.10.0
libtpu: 0.0.40
codegen_flags: <defaults>
</compile_context>

<pallas_src>
import jax
import jax.numpy as jnp
from jax.experimental import pallas as pl
from jax.experimental.pallas import tpu as pltpu

LRELU_SLOPE = 0.2
LN_EPS = 1e-5  # PyTorch nn.LayerNorm default


def _round_up(a, m):
    return ((a + m - 1) // m) * m


def _pick_grid_steps(B):
    """>=2 grid steps when possible (keeps both v7x TensorCores busy), <=4 batches/step."""
    for g in range(2, B + 1):
        if B % g == 0 and B // g <= 4:
            return g
    return 1


def residual_down_block(x, conv_w, conv_b, proj_w, proj_b, ln_w, ln_b):
    """x: (B, Cin, H, W) f32, NCHW.  Returns (B, Cout, Ho, Wo) f32."""
    B, Cin, H, W = x.shape
    Cout, _, kH, kW = conv_w.shape
    Ho, Wo = H - kH + 1, W - kW + 1          # stride=1, padding=0 (module defaults)
    S = Ho * Wo
    K = kH * kW

    # --- lane-dense layout choices -------------------------------------------------
    # Output columns are j = oh*W + ow (row stride W, not Wo): every tap (kh, kw) is a
    # contiguous lane slice of the flattened input at offset kh*W + kw. Columns with
    # ow >= Wo or j >= Ho*W are garbage: masked out of LN stats, sliced off afterwards.
    Lo = Ho * W                               # strided output columns
    Lp = _round_up(Lo, 128)                   # padded output lane width (unmasked stores)
    max_off = (kH - 1) * W + (kW - 1)         # largest tap lane offset
    Lx = _round_up(max_off + Lp, 128)         # padded flattened input width (>= H*W)
    Cin_p = _round_up(Cin, 16)                # bf16 sublane tile -> aligned in-kernel concat
    CKp = K * Cin_p

    grid_b = _pick_grid_steps(B)
    Bt = B // grid_b

    # --- wrapper-side prep (reshape / pad / cast only; no 9x im2col blow-up) --------
    xf = jnp.pad(x, ((0, 0), (0, Cin_p - Cin), (0, 0), (0, 0)))
    xf = xf.reshape(B, Cin_p, H * W)
    xf = jnp.pad(xf, ((0, 0), (0, 0), (0, Lx - H * W))).astype(jnp.bfloat16)

    # Fused weight: rows [0:Cout] = conv, rows [Cout:2Cout] = avg-pool + 1x1 projection.
    # Column order is tap-major, channel-minor: col = (kh*kW + kw)*Cin_p + c.
    w_conv = jnp.pad(conv_w, ((0, 0), (0, Cin_p - Cin), (0, 0), (0, 0)))
    w_conv = w_conv.transpose(0, 2, 3, 1).reshape(Cout, CKp)
    w_id = jnp.pad(proj_w / float(K), ((0, 0), (0, Cin_p - Cin)))
    w_id = jnp.tile(w_id, (1, K))                             # mean-over-window fold
    w_stack = jnp.concatenate([w_conv, w_id], axis=0).astype(jnp.bfloat16)
    b_stack = jnp.concatenate([conv_b, proj_b]).reshape(2 * Cout, 1).astype(jnp.float32)

    # LayerNorm affine + validity mask on the (Ho, W)-strided lane grid, zero padded.
    def _lanes(a2d):
        a = jnp.pad(a2d, ((0, 0), (0, W - Wo))).reshape(1, Lo)
        return jnp.pad(a, ((0, 0), (0, Lp - Lo))).astype(jnp.float32)

    lnw_l = _lanes(ln_w)
    lnb_l = _lanes(ln_b)
    mask_l = _lanes(jnp.ones((Ho, Wo), jnp.float32))

    inv_s = 1.0 / float(S)

    def kernel(x_ref, w_ref, b_ref, lnw_ref, lnb_ref, mask_ref, out_ref):
        # x_ref:   (Bt, Cin_p, Lx)  bf16  flattened, zero-padded input rows
        # w_ref:   (2*Cout, CKp)    bf16  stacked conv + projection weights
        # b_ref:   (2*Cout, 1)      f32   stacked biases
        # lnw/lnb: (1, Lp)          f32   LayerNorm affine on the strided lane grid
        # mask:    (1, Lp)          f32   1.0 at valid output columns else 0.0
        # out_ref: (Bt, Cout, Lp)   f32
        w = w_ref[...]
        bias = b_ref[...]
        lnw = lnw_ref[...]
        lnb = lnb_ref[...]
        maskf = mask_ref[...]

        for bt in range(Bt):                                   # static unroll, Bt <= 4
            xb = x_ref[bt]                                     # (Cin_p, Lx)
            # In-register "im2col": each tap is a contiguous lane slice of xb.
            taps = [xb[:, kh * W + kw: kh * W + kw + Lp]
                    for kh in range(kH) for kw in range(kW)]
            pat = jnp.concatenate(taps, axis=0)                # (CKp, Lp), tap-major

            # One fused MXU pass for both branches (bf16 in, f32 accumulate).
            acc = jnp.dot(w, pat, preferred_element_type=jnp.float32) + bias
            y = acc[:Cout]                                     # conv branch     (Cout, Lp)
            ident = acc[Cout:]                                 # identity branch (Cout, Lp)

            # LayerNorm((Ho, Wo)) per (b, c): masked, biased-variance statistics.
            mean = jnp.sum(y * maskf, axis=1, keepdims=True) * inv_s
            cen = y - mean
            var = jnp.sum(cen * cen * maskf, axis=1, keepdims=True) * inv_s
            yn = cen * jax.lax.rsqrt(var + LN_EPS) * lnw + lnb

            # LeakyReLU(0.2); regularise() is identity (dropout=None, noise=None defaults).
            act = jnp.where(yn >= 0, yn, LRELU_SLOPE * yn)

            out_ref[bt] = act + ident

    out = pl.pallas_call(
        kernel,
        out_shape=jax.ShapeDtypeStruct((B, Cout, Lp), jnp.float32),
        grid_spec=pltpu.PrefetchScalarGridSpec(
            num_scalar_prefetch=0,
            grid=(grid_b,),
            in_specs=[
                pl.BlockSpec((Bt, Cin_p, Lx), lambda i: (i, 0, 0)),
                pl.BlockSpec((2 * Cout, CKp), lambda i: (0, 0)),
                pl.BlockSpec((2 * Cout, 1), lambda i: (0, 0)),
                pl.BlockSpec((1, Lp), lambda i: (0, 0)),
                pl.BlockSpec((1, Lp), lambda i: (0, 0)),
                pl.BlockSpec((1, Lp), lambda i: (0, 0)),
            ],
            out_specs=pl.BlockSpec((Bt, Cout, Lp), lambda i: (i, 0, 0)),
        ),
        compiler_params=pltpu.CompilerParams(
            dimension_semantics=("parallel",)),
    )(xf, w_stack, b_stack, lnw_l, lnb_l, mask_l)

    # Undo the lane-dense strided layout: (B, Cout, Lp) -> (B, Cout, Ho, Wo).
    return out[:, :, :Lo].reshape(B, Cout, Ho, W)[:, :, :, :Wo]


def _reference(x, conv_w, conv_b, proj_w, proj_b, ln_w, ln_b):
    """Pure-JAX f32 reference matching the PyTorch forward."""
    kH, kW = conv_w.shape[2], conv_w.shape[3]
    y = jax.lax.conv_general_dilated(
        x, conv_w, window_strides=(1, 1), padding='VALID',
        dimension_numbers=('NCHW', 'OIHW', 'NCHW'))
    y = y + conv_b[None, :, None, None]
    mean = y.mean(axis=(2, 3), keepdims=True)
    var = ((y - mean) ** 2).mean(axis=(2, 3), keepdims=True)
    yn = (y - mean) / jnp.sqrt(var + LN_EPS)
    yn = yn * ln_w[None, None] + ln_b[None, None]
    act = jnp.where(yn >= 0, yn, LRELU_SLOPE * yn)
    pool = jax.lax.reduce_window(
        x, 0.0, jax.lax.add, (1, 1, kH, kW), (1, 1, 1, 1), 'VALID') / float(kH * kW)
    ident = jnp.einsum('bchw,oc->bohw', pool, proj_w) + proj_b[None, :, None, None]
    return act + ident


if __name__ == "__main__":
    B, Cin, Cout, H, W = 2, 4, 8, 16, 16
    kH = kW = 3
    Ho, Wo = H - kH + 1, W - kW + 1          # 14, 14

    key = jax.random.PRNGKey(0)
    kx, k1, k2, k3, k4, k5, k6 = jax.random.split(key, 7)
    x = jax.random.normal(kx, (B, Cin, H, W), jnp.float32)
    conv_w = 0.1 * jax.random.normal(k1, (Cout, Cin, kH, kW), jnp.float32)
    conv_b = 0.1 * jax.random.normal(k2, (Cout,), jnp.float32)
    proj_w = 0.1 * jax.random.normal(k3, (Cout, Cin), jnp.float32)   # 1x1 conv weight
    proj_b = 0.1 * jax.random.normal(k4, (Cout,), jnp.float32)
    ln_w = 1.0 + 0.1 * jax.random.normal(k5, (Ho, Wo), jnp.float32)  # LayerNorm affine
    ln_b = 0.1 * jax.random.normal(k6, (Ho, Wo), jnp.float32)

    out = residual_down_block(x, conv_w, conv_b, proj_w, proj_b, ln_w, ln_b)
    out = jax.block_until_ready(out)

    ref = _reference(x, conv_w, conv_b, proj_w, proj_b, ln_w, ln_b)
    assert out.shape == (B, Cout, Ho, Wo), out.shape
    err = float(jnp.max(jnp.abs(out - ref)))
    # bf16 matmul inputs -> slightly looser tolerance than the all-f32 version
    assert jnp.allclose(out, ref, rtol=2e-2, atol=2e-2), f"max abs err {err}"
    print("KERNEL_OK")
</pallas_src>

<mosaic_0001>
module attributes {stable_mosaic.version = 11 : i64} {
  func.func @kernel(%arg0: i32, %arg1: memref<1x16x384xbf16, #tpu.memory_space<vmem>>, %arg2: memref<16x144xbf16, #tpu.memory_space<vmem>>, %arg3: memref<16x1xf32, #tpu.memory_space<vmem>>, %arg4: memref<1x256xf32, #tpu.memory_space<vmem>>, %arg5: memref<1x256xf32, #tpu.memory_space<vmem>>, %arg6: memref<1x256xf32, #tpu.memory_space<vmem>>, %arg7: memref<1x8x256xf32, #tpu.memory_space<vmem>>) attributes {dimension_semantics = [#tpu.dimension_semantics<parallel>], iteration_bounds = array<i64: 2>, scalar_prefetch = 0 : i64, scratch_operands = 0 : i64, tpu.core_type = #tpu.core_type<tc>, window_params = [{transform_indices = @transform_0, window_bounds = array<i64: 1, 16, 384>}, {pipeline_mode = #tpu.pipeline_mode<synchronous>, transform_indices = @transform_1, window_bounds = array<i64: 16, 144>}, {pipeline_mode = #tpu.pipeline_mode<synchronous>, transform_indices = @transform_2, window_bounds = array<i64: 16, 1>}, {pipeline_mode = #tpu.pipeline_mode<synchronous>, transform_indices = @transform_3, window_bounds = array<i64: 1, 256>}, {pipeline_mode = #tpu.pipeline_mode<synchronous>, transform_indices = @transform_4, window_bounds = array<i64: 1, 256>}, {pipeline_mode = #tpu.pipeline_mode<synchronous>, transform_indices = @transform_5, window_bounds = array<i64: 1, 256>}, {transform_indices = @transform_6, window_bounds = array<i64: 1, 8, 256>}]} {
    %c0 = arith.constant 0 : index
    %c0_0 = arith.constant 0 : index
    %0 = vector.load %arg2[%c0, %c0_0] : memref<16x144xbf16, #tpu.memory_space<vmem>>, vector<16x144xbf16>
    %c0_1 = arith.constant 0 : index
    %c0_2 = arith.constant 0 : index
    %1 = vector.load %arg3[%c0_1, %c0_2] : memref<16x1xf32, #tpu.memory_space<vmem>>, vector<16x1xf32>
    %c0_3 = arith.constant 0 : index
    %c0_4 = arith.constant 0 : index
    %2 = vector.load %arg4[%c0_3, %c0_4] : memref<1x256xf32, #tpu.memory_space<vmem>>, vector<1x256xf32>
    %c0_5 = arith.constant 0 : index
    %c0_6 = arith.constant 0 : index
    %3 = vector.load %arg5[%c0_5, %c0_6] : memref<1x256xf32, #tpu.memory_space<vmem>>, vector<1x256xf32>
    %c0_7 = arith.constant 0 : index
    %c0_8 = arith.constant 0 : index
    %4 = vector.load %arg6[%c0_7, %c0_8] : memref<1x256xf32, #tpu.memory_space<vmem>>, vector<1x256xf32>
    %c0_9 = arith.constant 0 : index
    %c0_10 = arith.constant 0 : index
    %c0_11 = arith.constant 0 : index
    %5 = vector.load %arg1[%c0_9, %c0_10, %c0_11] : memref<1x16x384xbf16, #tpu.memory_space<vmem>>, vector<1x16x384xbf16>
    %6 = vector.shape_cast %5 : vector<1x16x384xbf16> to vector<16x384xbf16>
    %7 = vector.extract_strided_slice %6 {offsets = [0, 0], sizes = [16, 256], strides = [1, 1]} : vector<16x384xbf16> to vector<16x256xbf16>
    %8 = vector.extract_strided_slice %6 {offsets = [0, 1], sizes = [16, 256], strides = [1, 1]} : vector<16x384xbf16> to vector<16x256xbf16>
    %9 = vector.extract_strided_slice %6 {offsets = [0, 2], sizes = [16, 256], strides = [1, 1]} : vector<16x384xbf16> to vector<16x256xbf16>
    %10 = vector.extract_strided_slice %6 {offsets = [0, 16], sizes = [16, 256], strides = [1, 1]} : vector<16x384xbf16> to vector<16x256xbf16>
    %11 = vector.extract_strided_slice %6 {offsets = [0, 17], sizes = [16, 256], strides = [1, 1]} : vector<16x384xbf16> to vector<16x256xbf16>
    %12 = vector.extract_strided_slice %6 {offsets = [0, 18], sizes = [16, 256], strides = [1, 1]} : vector<16x384xbf16> to vector<16x256xbf16>
    %13 = vector.extract_strided_slice %6 {offsets = [0, 32], sizes = [16, 256], strides = [1, 1]} : vector<16x384xbf16> to vector<16x256xbf16>
    %14 = vector.extract_strided_slice %6 {offsets = [0, 33], sizes = [16, 256], strides = [1, 1]} : vector<16x384xbf16> to vector<16x256xbf16>
    %15 = vector.extract_strided_slice %6 {offsets = [0, 34], sizes = [16, 256], strides = [1, 1]} : vector<16x384xbf16> to vector<16x256xbf16>
    %16 = tpu.concatenate %7, %8, %9, %10, %11, %12, %13, %14, %15 in 0 : vector<16x256xbf16>, vector<16x256xbf16>, vector<16x256xbf16>, vector<16x256xbf16>, vector<16x256xbf16>, vector<16x256xbf16>, vector<16x256xbf16>, vector<16x256xbf16>, vector<16x256xbf16> -> vector<144x256xbf16>
    %cst = arith.constant dense<0.000000e+00> : vector<16x256xf32>
    %17 = tpu.matmul %0, %16, %cst {dimension_numbers = #tpu.dot_dimension_numbers<[1], [0], [0], [1], [0, 0, 1, 1], [], []>} : vector<16x144xbf16>, vector<144x256xbf16>, vector<16x256xf32> -> vector<16x256xf32>
    %18 = vector.broadcast %1 : vector<16x1xf32> to vector<16x256xf32>
    %19 = arith.addf %17, %18 : vector<16x256xf32>
    %20 = vector.extract_strided_slice %19 {offsets = [0, 0], sizes = [8, 256], strides = [1, 1]} : vector<16x256xf32> to vector<8x256xf32>
    %21 = vector.extract_strided_slice %19 {offsets = [8, 0], sizes = [8, 256], strides = [1, 1]} : vector<16x256xf32> to vector<8x256xf32>
    %22 = vector.broadcast %4 : vector<1x256xf32> to vector<8x256xf32>
    %23 = arith.mulf %20, %22 : vector<8x256xf32>
    %cst_12 = arith.constant dense<0.000000e+00> : vector<8xf32>
    %24 = vector.multi_reduction <add>, %23, %cst_12 [1] : vector<8x256xf32> to vector<8xf32>
    %25 = vector.shape_cast %24 : vector<8xf32> to vector<8x1xf32>
    %cst_13 = arith.constant 0.00510204071 : f32
    %26 = vector.broadcast %cst_13 : f32 to vector<8x1xf32>
    %27 = arith.mulf %25, %26 : vector<8x1xf32>
    %28 = vector.broadcast %27 : vector<8x1xf32> to vector<8x256xf32>
    %29 = arith.subf %20, %28 : vector<8x256xf32>
    %30 = arith.mulf %29, %29 : vector<8x256xf32>
    %31 = vector.broadcast %4 : vector<1x256xf32> to vector<8x256xf32>
    %32 = arith.mulf %30, %31 : vector<8x256xf32>
    %cst_14 = arith.constant dense<0.000000e+00> : vector<8xf32>
    %33 = vector.multi_reduction <add>, %32, %cst_14 [1] : vector<8x256xf32> to vector<8xf32>
    %34 = vector.shape_cast %33 : vector<8xf32> to vector<8x1xf32>
    %cst_15 = arith.constant 0.00510204071 : f32
    %35 = vector.broadcast %cst_15 : f32 to vector<8x1xf32>
    %36 = arith.mulf %34, %35 : vector<8x1xf32>
    %cst_16 = arith.constant 9.99999974E-6 : f32
    %37 = vector.broadcast %cst_16 : f32 to vector<8x1xf32>
    %38 = arith.addf %36, %37 : vector<8x1xf32>
    %39 = math.rsqrt %38 : vector<8x1xf32>
    %40 = vector.broadcast %39 : vector<8x1xf32> to vector<8x256xf32>
    %41 = arith.mulf %29, %40 : vector<8x256xf32>
    %42 = vector.broadcast %2 : vector<1x256xf32> to vector<8x256xf32>
    %43 = arith.mulf %41, %42 : vector<8x256xf32>
    %44 = vector.broadcast %3 : vector<1x256xf32> to vector<8x256xf32>
    %45 = arith.addf %43, %44 : vector<8x256xf32>
    %cst_17 = arith.constant 0.000000e+00 : f32
    %46 = vector.broadcast %cst_17 : f32 to vector<8x256xf32>
    %47 = arith.cmpf oge, %45, %46 : vector<8x256xf32>
    %cst_18 = arith.constant 2.000000e-01 : f32
    %48 = vector.broadcast %cst_18 : f32 to vector<8x256xf32>
    %49 = arith.mulf %48, %45 : vector<8x256xf32>
    %50 = arith.select %47, %45, %49 : vector<8x256xi1>, vector<8x256xf32>
    %51 = arith.addf %50, %21 : vector<8x256xf32>
    %c0_19 = arith.constant 0 : index
    %c0_20 = arith.constant 0 : index
    %c0_21 = arith.constant 0 : index
    %52 = vector.load %arg7[%c0_19, %c0_20, %c0_21] : memref<1x8x256xf32, #tpu.memory_space<vmem>>, vector<1x8x256xf32>
    %53 = vector.shape_cast %52 : vector<1x8x256xf32> to vector<8x256xf32>
    %54 = vector.shape_cast %51 : vector<8x256xf32> to vector<1x8x256xf32>
    tpu.vector_store %arg7[%c0_19, %c0_20, %c0_21], %54 {strides = array<i32>} : memref<1x8x256xf32, #tpu.memory_space<vmem>>, vector<1x8x256xf32>,
    return
  }
  func.func @transform_0(%arg0: i32) -> (i32, i32, i32) {
    %c0_i32 = arith.constant 0 : i32
    %c0_i32_0 = arith.constant 0 : i32
    %c0_i32_1 = arith.constant 0 : i32
    return %arg0, %c0_i32, %c0_i32_0 : i32, i32, i32
  }
  func.func @transform_1(%arg0: i32) -> (i32, i32) {
    %c0_i32 = arith.constant 0 : i32
    %c0_i32_0 = arith.constant 0 : i32
    %c0_i32_1 = arith.constant 0 : i32
    return %c0_i32, %c0_i32_0 : i32, i32
  }
  func.func @transform_2(%arg0: i32) -> (i32, i32) {
    %c0_i32 = arith.constant 0 : i32
    %c0_i32_0 = arith.constant 0 : i32
    %c0_i32_1 = arith.constant 0 : i32
    return %c0_i32, %c0_i32_0 : i32, i32
  }
  func.func @transform_3(%arg0: i32) -> (i32, i32) {
    %c0_i32 = arith.constant 0 : i32
    %c0_i32_0 = arith.constant 0 : i32
    %c0_i32_1 = arith.constant 0 : i32
    return %c0_i32, %c0_i32_0 : i32, i32
  }
  func.func @transform_4(%arg0: i32) -> (i32, i32) {
    %c0_i32 = arith.constant 0 : i32
    %c0_i32_0 = arith.constant 0 : i32
    %c0_i32_1 = arith.constant 0 : i32
    return %c0_i32, %c0_i32_0 : i32, i32
  }
  func.func @transform_5(%arg0: i32) -> (i32, i32) {
    %c0_i32 = arith.constant 0 : i32
    %c0_i32_0 = arith.constant 0 : i32
    %c0_i32_1 = arith.constant 0 : i32
    return %c0_i32, %c0_i32_0 : i32, i32
  }
  func.func @transform_6(%arg0: i32) -> (i32, i32, i32) {
    %c0_i32 = arith.constant 0 : i32
    %c0_i32_0 = arith.constant 0 : i32
    %c0_i32_1 = arith.constant 0 : i32
    return %arg0, %c0_i32, %c0_i32_0 : i32, i32, i32
  }
}

</mosaic_0001>

<llo_original>
// kernel: tpu_custom_call.1
$region0: #{tpu_custom_call.1}
  #allocation0 [shape = 'u32[]', space=smem, size = 0x4, offset = 0x4, fixed_abs, tag = 'smem constant byte address 0x4 - core index']
  #allocation1 [shape = 'u32[144,128]{1,0:T(1,128)}', space=vmem, size = 0x12000, scoped, tag = 'internal scratch']
  %s0 = inlined_call_operand.hbm [shape: bf16[2,16,384], index: 0, kind: input, shape index: {}]
  %s1 = inlined_call_operand.vmem [shape: bf16[16,144], index: 1, kind: input, shape index: {}]
  %s2 = inlined_call_operand.vmem [shape: f32[16,1], index: 2, kind: input, shape index: {}]
  %s3 = inlined_call_operand.vmem [shape: f32[1,256], index: 3, kind: input, shape index: {}]
  %s4 = inlined_call_operand.vmem [shape: f32[1,256], index: 4, kind: input, shape index: {}]
  %s5 = inlined_call_operand.vmem [shape: f32[1,256], index: 5, kind: input, shape index: {}]
  %s6 = inlined_call_operand.hbm [shape: f32[2,8,256], index: 6, kind: output, shape index: {}]
  %s7 = sld [smem:[#allocation0]]
  $region61: #{tpu_custom_call.1} parent=0
    _
  %s9 = ssub.s32 1, %s7
  %s10 = scalar_select 0, %s9, %s7
  $region1: #{tpu_custom_call.1} parent=0
    #allocation2 [shape = 'u8[24576]{0}', space=vmem, size = 0x6000, scoped, tag = 'input window, operand 0']
    #allocation3 [shape = 's32[2]{0}', space=sflag, size = 0x8, scoped, tag = 'scoped memory for tpu_custom_call.1']
    #allocation4 [shape = 's32[2]{0}', space=sflag, size = 0x8, scoped, tag = 'scoped memory for tpu_custom_call.1']
    #allocation5 [shape = 'u8[16384]{0}', space=vmem, size = 0x4000, scoped, tag = 'output window, operand 0']
    %11 = vsyncpa [#allocation3], 0
    %s12 = scalar_lea.sflag [#allocation3], 1
    %13 = vsyncpa %s12, 0
    %14 = vsyncpa [#allocation4], 0
    %s15 = scalar_lea.sflag [#allocation4], 1
    %16 = vsyncpa %s15, 0
    loop: start=0, step=1, limit=4
    $region2: #{tpu_custom_call.1} parent=1 // loop_pre_header
      _
    $region3: #{tpu_custom_call.1} parent=1 // loop_header
      %s18 = sphi 0, %s22
      %p19 = scmp.ge.s32.totalorder %s18, 4
      %s28 = sphi 0, %s30
      %s31 = sphi 0, %s28
      %s32 = sphi 0, %s31
      %s48 = sphi 0, %s32
      %s52 = sphi 0, %s52
      %s54 = sphi 0, %s52
      %s55 = sphi 0, %s54
      %s69 = sphi 0, %s55
      %s73 = sphi 0, %s73
      %s75 = sphi 0, %s73
      %s76 = sphi 0, %s75
      %s90 = sphi 0, %s76
      %s94 = sphi 0, %s94
      %s96 = sphi 0, %s94
      %s97 = sphi 0, %s96
      %s111 = sphi 0, %s97
      %s115 = sphi 0, %s115
      %s117 = sphi 0, %s115
      %s118 = sphi 0, %s117
      %s132 = sphi 0, %s118
      %s136 = sphi 0, %s136
      %s138 = sphi 0, %s136
      %s139 = sphi 0, %s138
      %s153 = sphi 0, %s139
      %s159 = sphi 0, %s161
      %s162 = sphi 0, %s159
      %s163 = sphi 0, %s162
      %s179 = sphi 0, %s163
    $region4: #{tpu_custom_call.1} parent=1 // loop_header_branch
      %21 = sbr.rel (%p19) target = $region8
    $region5: #{tpu_custom_call.1} parent=1 // loop_body
      %s23 = ssub.s32 %s18, 1
      %s24 = ssub.s32 %s18, 2
      %s25 = sadd.s32 %s18, 1
      %s26 = ssub.s32 %s18, %s25
      %p27 = scmp.eq.s32.totalorder %s26, 0
      %s29 = sadd.s32 %s28, 1
      %s30 = scalar_select %p27, %s28, %s29
      %p33 = pneg %p27
      %p34 = scmp.eq.s32.totalorder %s18, 1
      %p35 = por %p33, %p34
      %p36 = scmp.ne.s32.totalorder %s28, %s31
      %p37 = scmp.eq.s32.totalorder %s18, 0
      %p38 = por %p36, %p37
      %p39 = scmp.ne.s32.totalorder %s28, %s31
      %p40 = scmp.eq.s32.totalorder %s23, 1
      %p41 = por %p39, %p40
      %p42 = scmp.ne.s32.totalorder %s31, %s32
      %p43 = scmp.eq.s32.totalorder %s23, 0
      %p44 = por %p42, %p43
      %p45 = scmp.ne.s32.totalorder %s31, %s32
      %p46 = scmp.eq.s32.totalorder %s24, 1
      %p47 = por %p45, %p46
      %p49 = scmp.ne.s32.totalorder %s32, %s48
      %p50 = scmp.eq.s32.totalorder %s24, 0
      %p51 = por %p49, %p50
      %s53 = sadd.s32 %s52, 1
      %p56 = scmp.eq.s32.totalorder %s18, 1
      %p57 = scmp.ne.s32.totalorder %s52, %s54
      %p58 = scmp.eq.s32.totalorder %s18, 0
      %p59 = por %p57, %p58
      %p60 = scmp.ne.s32.totalorder %s52, %s54
      %p61 = scmp.eq.s32.totalorder %s23, 1
      %p62 = por %p60, %p61
      %p63 = scmp.ne.s32.totalorder %s54, %s55
      %p64 = scmp.eq.s32.totalorder %s23, 0
      %p65 = por %p63, %p64
      %p66 = scmp.ne.s32.totalorder %s54, %s55
      %p67 = scmp.eq.s32.totalorder %s24, 1
      %p68 = por %p66, %p67
      %p70 = scmp.ne.s32.totalorder %s55, %s69
      %p71 = scmp.eq.s32.totalorder %s24, 0
      %p72 = por %p70, %p71
      %s74 = sadd.s32 %s73, 1
      %p77 = scmp.eq.s32.totalorder %s18, 1
      %p78 = scmp.ne.s32.totalorder %s73, %s75
      %p79 = scmp.eq.s32.totalorder %s18, 0
      %p80 = por %p78, %p79
      %p81 = scmp.ne.s32.totalorder %s73, %s75
      %p82 = scmp.eq.s32.totalorder %s23, 1
      %p83 = por %p81, %p82
      %p84 = scmp.ne.s32.totalorder %s75, %s76
      %p85 = scmp.eq.s32.totalorder %s23, 0
      %p86 = por %p84, %p85
      %p87 = scmp.ne.s32.totalorder %s75, %s76
      %p88 = scmp.eq.s32.totalorder %s24, 1
      %p89 = por %p87, %p88
      %p91 = scmp.ne.s32.totalorder %s76, %s90
      %p92 = scmp.eq.s32.totalorder %s24, 0
      %p93 = por %p91, %p92
      %s95 = sadd.s32 %s94, 1
      %p98 = scmp.eq.s32.totalorder %s18, 1
      %p99 = scmp.ne.s32.totalorder %s94, %s96
      %p100 = scmp.eq.s32.totalorder %s18, 0
      %p101 = por %p99, %p100
      %p102 = scmp.ne.s32.totalorder %s94, %s96
      %p103 = scmp.eq.s32.totalorder %s23, 1
      %p104 = por %p102, %p103
      %p105 = scmp.ne.s32.totalorder %s96, %s97
      %p106 = scmp.eq.s32.totalorder %s23, 0
      %p107 = por %p105, %p106
      %p108 = scmp.ne.s32.totalorder %s96, %s97
      %p109 = scmp.eq.s32.totalorder %s24, 1
      %p110 = por %p108, %p109
      %p112 = scmp.ne.s32.totalorder %s97, %s111
      %p113 = scmp.eq.s32.totalorder %s24, 0
      %p114 = por %p112, %p113
      %s116 = sadd.s32 %s115, 1
      %p119 = scmp.eq.s32.totalorder %s18, 1
      %p120 = scmp.ne.s32.totalorder %s115, %s117
      %p121 = scmp.eq.s32.totalorder %s18, 0
      %p122 = por %p120, %p121
      %p123 = scmp.ne.s32.totalorder %s115, %s117
      %p124 = scmp.eq.s32.totalorder %s23, 1
      %p125 = por %p123, %p124
      %p126 = scmp.ne.s32.totalorder %s117, %s118
      %p127 = scmp.eq.s32.totalorder %s23, 0
      %p128 = por %p126, %p127
      %p129 = scmp.ne.s32.totalorder %s117, %s118
      %p130 = scmp.eq.s32.totalorder %s24, 1
      %p131 = por %p129, %p130
      %p133 = scmp.ne.s32.totalorder %s118, %s132
      %p134 = scmp.eq.s32.totalorder %s24, 0
      %p135 = por %p133, %p134
      %s137 = sadd.s32 %s136, 1
      %p140 = scmp.eq.s32.totalorder %s18, 1
      %p141 = scmp.ne.s32.totalorder %s136, %s138
      %p142 = scmp.eq.s32.totalorder %s18, 0
      %p143 = por %p141, %p142
      %p144 = scmp.ne.s32.totalorder %s136, %s138
      %p145 = scmp.eq.s32.totalorder %s23, 1
      %p146 = por %p144, %p145
      %p147 = scmp.ne.s32.totalorder %s138, %s139
      %p148 = scmp.eq.s32.totalorder %s23, 0
      %p149 = por %p147, %p148
      %p150 = scmp.ne.s32.totalorder %s138, %s139
      %p151 = scmp.eq.s32.totalorder %s24, 1
      %p152 = por %p150, %p151
      %p154 = scmp.ne.s32.totalorder %s139, %s153
      %p155 = scmp.eq.s32.totalorder %s24, 0
      %p156 = por %p154, %p155
      %s157 = ssub.s32 %s18, %s25
      %p158 = scmp.eq.s32.totalorder %s157, 0
      %s160 = sadd.s32 %s159, 1
      %s161 = scalar_select %p158, %s159, %s160
      %p164 = pneg %p158
      %p165 = scmp.eq.s32.totalorder %s18, 1
      %p166 = por %p164, %p165
      %p167 = scmp.ne.s32.totalorder %s159, %s162
      %p168 = scmp.eq.s32.totalorder %s18, 0
      %p169 = por %p167, %p168
      %p170 = scmp.ne.s32.totalorder %s159, %s162
      %p171 = scmp.eq.s32.totalorder %s23, 1
      %p172 = por %p170, %p171
      %p173 = scmp.ne.s32.totalorder %s162, %s163
      %p174 = scmp.eq.s32.totalorder %s23, 0
      %p175 = por %p173, %p174
      %p176 = scmp.ne.s32.totalorder %s162, %s163
      %p177 = scmp.eq.s32.totalorder %s24, 1
      %p178 = por %p176, %p177
      %p180 = scmp.ne.s32.totalorder %s163, %s179
      %p181 = scmp.eq.s32.totalorder %s24, 0
      %p182 = por %p180, %p181
      %p183 = scmp.le.s32.totalorder 1, %s18
      %p184 = scmp.lt.s32.totalorder %s18, 3
      %p185 = pnand %p183, %p184
      %p186 = pneg %p185
      // Predicated region
      $region9: #{tpu_custom_call.1} parent=5 // pred_check
        _
      $region10: #{tpu_custom_call.1} parent=5 // pred_check_branch
        %188 = sbr.rel (%p185) target = $region12
      $region11: #{tpu_custom_call.1} parent=5 // pred_region
        %s189 = ssub.s32 %s18, 1
        // Predicated region
        $region13: #{tpu_custom_call.1} parent=11 // pred_check
          %p190 = pneg %p65
        $region14: #{tpu_custom_call.1} parent=11 // pred_check_branch
          %192 = sbr.rel (%p190) target = $region16
        $region15: #{tpu_custom_call.1} parent=11 // pred_region
          _
        $region16: #{tpu_custom_call.1} parent=11 // pred_fallthru
          _
        // Predicated region
        $region17: #{tpu_custom_call.1} parent=11 // pred_check
          %p193 = pneg %p86
        $region18: #{tpu_custom_call.1} parent=11 // pred_check_branch
          %195 = sbr.rel (%p193) target = $region20
        $region19: #{tpu_custom_call.1} parent=11 // pred_region
          _
        $region20: #{tpu_custom_call.1} parent=11 // pred_fallthru
          _
        // Predicated region
        $region21: #{tpu_custom_call.1} parent=11 // pred_check
          %p196 = pneg %p107
        $region22: #{tpu_custom_call.1} parent=11 // pred_check_branch
          %198 = sbr.rel (%p196) target = $region24
        $region23: #{tpu_custom_call.1} parent=11 // pred_region
          _
        $region24: #{tpu_custom_call.1} parent=11 // pred_fallthru
          _
        // Predicated region
        $region25: #{tpu_custom_call.1} parent=11 // pred_check
          %p199 = pneg %p128
        $region26: #{tpu_custom_call.1} parent=11 // pred_check_branch
          %201 = sbr.rel (%p199) target = $region28
        $region27: #{tpu_custom_call.1} parent=11 // pred_region
          _
        $region28: #{tpu_custom_call.1} parent=11 // pred_fallthru
          _
        // Predicated region
        $region29: #{tpu_custom_call.1} parent=11 // pred_check
          %p202 = pneg %p149
        $region30: #{tpu_custom_call.1} parent=11 // pred_check_branch
          %204 = sbr.rel (%p202) target = $region32
        $region31: #{tpu_custom_call.1} parent=11 // pred_region
          _
        $region32: #{tpu_custom_call.1} parent=11 // pred_fallthru
          _
      $region12: #{tpu_custom_call.1} parent=5 // pred_fallthru
        _
      %p205 = scmp.lt.s32.totalorder %s18, 2
      // Predicated region
      $region33: #{tpu_custom_call.1} parent=5 // pred_check
        %p206 = pneg %p205
      $region34: #{tpu_custom_call.1} parent=5 // pred_check_branch
        %208 = sbr.rel (%p206) target = $region36
      $region35: #{tpu_custom_call.1} parent=5 // pred_region
        // Predicated region
        $region37: #{tpu_custom_call.1} parent=35 // pred_check
          %p209 = pneg %p38
        $region38: #{tpu_custom_call.1} parent=35 // pred_check_branch
          %211 = sbr.rel (%p209) target = $region40
        $region39: #{tpu_custom_call.1} parent=35 // pred_region
          %s212 = sand.u32 %s28, 1
          %s213 = scalar_lea.sflag [#allocation3], %s212
          %s214 = sand.u32 %s28, 1
          %s215 = smul.addr %s214, 24
          %s216 = scalar_lea.vmem [#allocation2], %s215
          %s218 = ssub.s32 384, 384
          %219 = vsyncadd %s213, %s218
          %s220 = smul.addr %s18, 6
          %s221 = smul.addr %s220, 64
          %s222 = scalar_lea.hbm %s0, %s221
          %s223 = sshll.u32 %s216, 4
          %s224 = int_to_ptr.vmem [resolvable:$true] %s223
          %229 = dma.hbm_to_vmem [thread:$0]  %s222, 384, %s224, %s213, 192, 192, 12
        $region40: #{tpu_custom_call.1} parent=35 // pred_fallthru
          _
      $region36: #{tpu_custom_call.1} parent=5 // pred_fallthru
        _
      %p230 = scmp.le.s32.totalorder 1, %s18
      %p231 = scmp.lt.s32.totalorder %s18, 3
      %p232 = pnand %p230, %p231
      %p233 = pneg %p232
      // Predicated region
      $region41: #{tpu_custom_call.1} parent=5 // pred_check
        _
      $region42: #{tpu_custom_call.1} parent=5 // pred_check_branch
        %235 = sbr.rel (%p232) target = $region44
      $region43: #{tpu_custom_call.1} parent=5 // pred_region
        %s236 = ssub.s32 %s18, 1
        %s237 = sand.u32 %s31, 1
        %s238 = scalar_lea.sflag [#allocation3], %s237
        %s239 = sand.u32 %s31, 1
        %s240 = smul.addr %s239, 24
        %s241 = scalar_lea.vmem [#allocation2], %s240
        // Predicated region
        $region45: #{tpu_custom_call.1} parent=43 // pred_check
          %p242 = pneg %p44
        $region46: #{tpu_custom_call.1} parent=43 // pred_check_branch
          %244 = sbr.rel (%p242) target = $region48
        $region47: #{tpu_custom_call.1} parent=43 // pred_region
          %245 = dma.done %s238, 384
        $region48: #{tpu_custom_call.1} parent=43 // pred_fallthru
          _
        %s246 = sand.u32 %s31, 1
        %s247 = scalar_lea.sflag [#allocation3], %s246
        %s248 = sand.u32 %s31, 1
        %s249 = smul.addr %s248, 24
        %s250 = scalar_lea.vmem [#allocation2], %s249
        %p251 = pneg %p44
        %p252 = pneg %p41
        %p253 = pneg %p65
        %p254 = pneg %p62
        %p255 = pneg %p86
        %p256 = pneg %p83
        %p257 = pneg %p107
        %p258 = pneg %p104
        %p259 = pneg %p128
        %p260 = pneg %p125
        %p261 = pneg %p149
        %p262 = pneg %p146
        %p263 = pneg %p175
        %p264 = pneg %p172
        %s265 = sand.u32 %s162, 1
        %s266 = scalar_lea.sflag [#allocation4], %s265
        %s267 = sand.u32 %s162, 1
        %s268 = smul.addr %s267, 16
        %s269 = scalar_lea.vmem [#allocation5], %s268
        %v271 = vld [vmem:[%s1] sm:$0xff]
        %v272 = vld [vmem:[%s1 + $0x8] sm:$0xff]
        %v273 = vld [vmem:[%s2] sm:$0xff]
        %v274 = vld [vmem:[%s2 + $0x8] sm:$0xff]
        %v275 = vld [vmem:[%s3] sm:$0x3]
        %v276 = vld [vmem:[%s4] sm:$0x3]
        %v277 = vld [vmem:[%s5] sm:$0x3]
        %v278 = vld [vmem:[%s241] sm:$0xff]
        %v279 = vld [vmem:[%s241 + $0x8] sm:$0xf]
        %v280 = vld [vmem:[%s241 + $0xc] sm:$0xff]
        %v281 = vld [vmem:[%s241 + $0x14] sm:$0xf]
        %v284 = vunpack.c.l.b16 %v278
        %v285 = vunpack.c.h.b16 %v278
        %v286 = vunpack.c.l.b16 %v280
        %v287 = vunpack.c.h.b16 %v280
        %v288 = vpack.c.b16 %v286, %v284
        %v289 = vpack.c.b16 %v287, %v285
        %v294 = vunpack.c.l.b16 %v279
        %v295 = vunpack.c.l.b16 %v281
        %v296 = vpack.c.b16 %v295, %v294
        %297 = vrot.lane.b32.xlu0 %v288, 127
        %v298 = vpop.permute.xlu0 %297
        %299 = vrot.lane.b32.xlu0 %v289, 127
        %v300 = vpop.permute.xlu0 %299
        %301 = vrot.lane.b32.xlu0 %v296, 127
        %v302 = vpop.permute.xlu0 %301
        %vm303 = vcmask 1039360
        %v304 = vsel %vm303, %v298, %v300
        %v305 = vsel %vm303, %v300, %v302
        %308 = vrot.lane.b32.xlu0 %v288, 126
        %v309 = vpop.permute.xlu0 %308
        %310 = vrot.lane.b32.xlu0 %v289, 126
        %v311 = vpop.permute.xlu0 %310
        %312 = vrot.lane.b32.xlu0 %v296, 126
        %v313 = vpop.permute.xlu0 %312
        %vm314 = vcmask 1031168
        %v315 = vsel %vm314, %v309, %v311
        %v316 = vsel %vm314, %v311, %v313
        %319 = vrot.lane.b32.xlu0 %v288, 112
        %v320 = vpop.permute.xlu0 %319
        %321 = vrot.lane.b32.xlu0 %v289, 112
        %v322 = vpop.permute.xlu0 %321
        %323 = vrot.lane.b32.xlu0 %v296, 112
        %v324 = vpop.permute.xlu0 %323
        %vm325 = vcmask 916480
        %v326 = vsel %vm325, %v320, %v322
        %v327 = vsel %vm325, %v322, %v324
        %330 = vrot.lane.b32.xlu0 %v288, 111
        %v331 = vpop.permute.xlu0 %330
        %332 = vrot.lane.b32.xlu0 %v289, 111
        %v333 = vpop.permute.xlu0 %332
        %334 = vrot.lane.b32.xlu0 %v296, 111
        %v335 = vpop.permute.xlu0 %334
        %vm336 = vcmask 908288
        %v337 = vsel %vm336, %v331, %v333
        %v338 = vsel %vm336, %v333, %v335
        %341 = vrot.lane.b32.xlu0 %v288, 110
        %v342 = vpop.permute.xlu0 %341
        %343 = vrot.lane.b32.xlu0 %v289, 110
        %v344 = vpop.permute.xlu0 %343
        %345 = vrot.lane.b32.xlu0 %v296, 110
        %v346 = vpop.permute.xlu0 %345
        %vm347 = vcmask 900096
        %v348 = vsel %vm347, %v342, %v344
        %v349 = vsel %vm347, %v344, %v346
        %352 = vrot.lane.b32.xlu0 %v288, 96
        %v353 = vpop.permute.xlu0 %352
        %354 = vrot.lane.b32.xlu0 %v289, 96
        %v355 = vpop.permute.xlu0 %354
        %356 = vrot.lane.b32.xlu0 %v296, 96
        %v357 = vpop.permute.xlu0 %356
        %vm358 = vcmask 785408
        %v359 = vsel %vm358, %v353, %v355
        %v360 = vsel %vm358, %v355, %v357
        %363 = vrot.lane.b32.xlu0 %v288, 95
        %v364 = vpop.permute.xlu0 %363
        %365 = vrot.lane.b32.xlu0 %v289, 95
        %v366 = vpop.permute.xlu0 %365
        %367 = vrot.lane.b32.xlu0 %v296, 95
        %v368 = vpop.permute.xlu0 %367
        %vm369 = vcmask 777216
        %v370 = vsel %vm369, %v364, %v366
        %v371 = vsel %vm369, %v366, %v368
        %374 = vrot.lane.b32.xlu0 %v288, 94
        %v375 = vpop.permute.xlu0 %374
        %376 = vrot.lane.b32.xlu0 %v289, 94
        %v377 = vpop.permute.xlu0 %376
        %378 = vrot.lane.b32.xlu0 %v296, 94
        %v379 = vpop.permute.xlu0 %378
        %vm380 = vcmask 769024
        %v381 = vsel %vm380, %v375, %v377
        %v382 = vsel %vm380, %v377, %v379
        %386 = vset.pattern.permute.xlu0 0
        %387 = vperm.xlu0 %386, %v273
        %v388 = vpop.permute.xlu0 %387
        %391 = vset.pattern.permute.xlu0 0
        %392 = vperm.xlu0 %391, %v274
        %v393 = vpop.permute.xlu0 %392
        %v397 = vunpack.c.l.b16 %v271
        %v398 = vunpack.c.h.b16 %v271
        %v399 = vunpack.c.l.b16 %v272
        %v400 = vunpack.c.h.b16 %v272
        %v401 = vpack.c.b16 %v399, %v397
        %v402 = vpack.c.b16 %v400, %v398
        %vm404 = vcmask 130048
        %v406 = vsel %vm404, %v402, 0
        %408 = vmatprep.subr.bf16.mxu0 %v371
        %409 = vmatpush1.bf16.msra.mxu0 %v370
        %410 = vmatprep.subr.bf16.mxu0 %v360
        %411 = vmatpush1.bf16.msra.mxu0 %v359
        %412 = vmatprep.subr.bf16.mxu0 %v349
        %413 = vmatpush1.bf16.msra.mxu0 %v348
        %414 = vmatprep.subr.bf16.mxu0 %v338
        %415 = vmatpush1.bf16.msra.mxu0 %v337
        %416 = vmatprep.subr.bf16.mxu0 %v327
        %417 = vmatpush1.bf16.msra.mxu0 %v326
        %418 = vmatprep.subr.bf16.mxu0 %v316
        %419 = vmatpush1.bf16.msra.mxu0 %v315
        %420 = vmatprep.subr.bf16.mxu0 %v305
        %421 = vmatpush1.bf16.msra.mxu0 %v304
        %422 = vmatprep.subr.bf16.mxu0 %v289
        %423 = vmatpush1.bf16.msra.mxu0 %v288
        %424 = vmatprep.subr.bf16.mxu0 0
        %425 = vmatpush2.bf16.msra.mxu0 0
        %426 = vmatprep.subr.bf16.mxu0 0
        %427 = vmatpush2.bf16.msra.mxu0 0
        %428 = vmatprep.subr.bf16.mxu0 0
        %429 = vmatpush2.bf16.msra.mxu0 0
        %430 = vmatprep.subr.bf16.mxu0 0
        %431 = vmatpush2.bf16.msra.mxu0 0
        %432 = vmatprep.subr.bf16.mxu0 0
        %433 = vmatpush2.bf16.msra.mxu0 0
        %434 = vmatprep.subr.bf16.mxu0 0
        %435 = vmatpush2.bf16.msra.mxu0 0
        %436 = vmatprep.subr.bf16.mxu0 0
        %437 = vmatpush2.bf16.msra.mxu0 0
        %438 = vmatprep.subr.bf16.mxu0 %v382
        %439 = vmatpush2.bf16.msra.mxu0 %v381
        %440 = vmatprep.mubr.bf16.mxu0 %v406
        %441 = vmatmul.mubr.bf16.gmra.mxu0 %v401
        %v442 = vpop.f32.mrf.mxu0
        %v443 = vadd.f32 %v388, %v442
        %v444 = vpop.f32.mrf.mxu0
        %v445 = vadd.f32 %v388, %v444
        %v446 = vpop.f32.mrf.mxu0
        %v447 = vadd.f32 %v393, %v446
        %v448 = vpop.f32.mrf.mxu0
        %v449 = vadd.f32 %v393, %v448
        %450 = vdwg.mxu0
        %v452 = vlaneseq
        %v453 = vshrl.u32 %v452, 7
        %v454 = vsub.s32 0, %v453
        %v455 = vrot.slane %v277, %v454
        %v456 = vlaneseq
        %v457 = vshrl.u32 %v456, 7
        %v458 = vsub.s32 1, %v457
        %v459 = vrot.slane %v277, %v458
        %v462 = vmul.f32 %v443, %v455
        %v463 = vmul.f32 %v445, %v459
        %v464 = vadd.f32 %v462, %v463
        %465 = vadd.xlane.f32.xlu0 %v464
        %v466 = vpop.xlane.xlu0 %465
        %v467 = vmul.f32 %v466, 0.0051020407
        %v468 = vsub.f32 %v443, %v467
        %v469 = vsub.f32 %v445, %v467
        %v470 = vmul.f32 %v468, %v468
        %v471 = vmul.f32 %v469, %v469
        %v472 = vmul.f32 %v470, %v455
        %v473 = vmul.f32 %v471, %v459
        %v474 = vadd.f32 %v472, %v473
        %475 = vadd.xlane.f32.xlu0 %v474
        %v476 = vpop.xlane.xlu0 %475
        %v477 = vmul.f32 %v476, 0.0051020407
        %v478 = vadd.f32 %v477, 1e-05
        %v479 = vrsqrt.pop %v478
        %v480 = vmul.f32 %v468, %v479
        %v481 = vmul.f32 %v469, %v479
        %v483 = vlaneseq
        %v484 = vshrl.u32 %v483, 7
        %v485 = vsub.s32 0, %v484
        %v486 = vrot.slane %v275, %v485
        %v487 = vlaneseq
        %v488 = vshrl.u32 %v487, 7
        %v489 = vsub.s32 1, %v488
        %v490 = vrot.slane %v275, %v489
        %v493 = vmul.f32 %v480, %v486
        %v494 = vmul.f32 %v481, %v490
        %v496 = vlaneseq
        %v497 = vshrl.u32 %v496, 7
        %v498 = vsub.s32 0, %v497
        %v499 = vrot.slane %v276, %v498
        %v500 = vlaneseq
        %v501 = vshrl.u32 %v500, 7
        %v502 = vsub.s32 1, %v501
        %v503 = vrot.slane %v276, %v502
        %v506 = vadd.f32 %v493, %v499
        %v507 = vadd.f32 %v494, %v503
        %vm508 = vcmp.ge.f32.partialorder %v506, 0.0
        %vm509 = vcmp.ge.f32.partialorder %v507, 0.0
        %v510 = vmul.f32 %v506, 0.2
        %v511 = vmul.f32 %v507, 0.2
        %v512 = vsel %vm508, %v506, %v510
        %v513 = vsel %vm509, %v507, %v511
        %v514 = vadd.f32 %v512, %v447
        %v515 = vadd.f32 %v513, %v449
        %516 = vst [vmem:[%s269] sm:$0xff] %v514
        %517 = vst [vmem:[%s269 + $0x8] sm:$0xff] %v515
        %s518 = sand.u32 %s162, 1
        %s519 = scalar_lea.sflag [#allocation4], %s518
        %s520 = sand.u32 %s162, 1
        %s521 = smul.addr %s520, 16
        %s522 = scalar_lea.vmem [#allocation5], %s521
        // Predicated region
        $region49: #{tpu_custom_call.1} parent=43 // pred_check
          %p523 = pneg %p172
        $region50: #{tpu_custom_call.1} parent=43 // pred_check_branch
          %525 = sbr.rel (%p523) target = $region52
        $region51: #{tpu_custom_call.1} parent=43 // pred_region
          %s527 = ssub.s32 256, 256
          %528 = vsyncadd %s519, %s527
          %s529 = smul.addr %s23, 2
          %s530 = smul.addr %s529, 128
          %s531 = scalar_lea.hbm %s6, %s530
          %s533 = sshll.u32 %s522, 4
          %s534 = int_to_ptr.vmem [resolvable:$true] %s533
          %536 = dma.vmem_to_hbm [thread:$0]  %s534, 256, %s531, %s519
        $region52: #{tpu_custom_call.1} parent=43 // pred_fallthru
          _
      $region44: #{tpu_custom_call.1} parent=5 // pred_fallthru
        _
      %p537 = scmp.le.s32.totalorder 2, %s18
      // Predicated region
      $region53: #{tpu_custom_call.1} parent=5 // pred_check
        %p538 = pneg %p537
      $region54: #{tpu_custom_call.1} parent=5 // pred_check_branch
        %540 = sbr.rel (%p538) target = $region56
      $region55: #{tpu_custom_call.1} parent=5 // pred_region
        %s541 = ssub.s32 %s18, 2
        // Predicated region
        $region57: #{tpu_custom_call.1} parent=55 // pred_check
          %p542 = pneg %p178
        $region58: #{tpu_custom_call.1} parent=55 // pred_check_branch
          %544 = sbr.rel (%p542) target = $region60
        $region59: #{tpu_custom_call.1} parent=55 // pred_region
          %s545 = sand.u32 %s163, 1
          %s546 = scalar_lea.sflag [#allocation4], %s545
          %s547 = sand.u32 %s163, 1
          %s548 = smul.addr %s547, 16
          %s549 = scalar_lea.vmem [#allocation5], %s548
          %550 = dma.done %s546, 256
        $region60: #{tpu_custom_call.1} parent=55 // pred_fallthru
          _
      $region56: #{tpu_custom_call.1} parent=5 // pred_fallthru
        _
    $region6: #{tpu_custom_call.1} parent=1 // loop_footer
      %s22 = sadd.s32 1, %s18
    $region7: #{tpu_custom_call.1} parent=1 // loop_footer_branch
      %17 = sbr.rel target = $region3
    $region8: #{tpu_custom_call.1} parent=1 // loop_exit
      _
    %551 = vsyncpa [#allocation3], 1
    %s552 = scalar_lea.sflag [#allocation3], 1
    %553 = vsyncpa %s552, 1
    %554 = vsyncpa [#allocation4], 1
    %s555 = scalar_lea.sflag [#allocation4], 1
    %556 = vsyncpa %s555, 1

</llo_original>
